<compile_context>
chip_gen: v5e
topology: v5e:2x2
jax: 0.10.0
libtpu: 0.0.40
codegen_flags: <defaults>
</compile_context>

<pallas_src>
import functools

import jax
import jax.numpy as jnp
import numpy as np
from jax.experimental import pallas as pl
from jax.experimental.pallas import tpu as pltpu


# ---------------------------------------------------------------------------
# Fused Pallas kernel: one matmul + bias + PReLU.
#   out = PReLU( pooled @ w_total + b_head )
# where w_total = conv1_grey @ proj @ (BN1/Linear/BN2 folded), all host-folded.
# ---------------------------------------------------------------------------
def _head_kernel(pooled_ref, w_ref, b_ref, alpha_ref, o_ref):
    # pooled_ref : [tm, k*k]  bf16   strided mean of the image over patches
    # w_ref      : [k*k, E]   bf16   fully folded weight (host, f32 fold)
    # b_ref      : [1, E]     f32    fully folded bias
    # alpha_ref  : [1]        f32    PReLU alpha (SMEM scalar path)
    # o_ref      : [tm, E]    f32/bf16
    h = jnp.dot(pooled_ref[...], w_ref[...],
                preferred_element_type=jnp.float32)             # [tm, E] f32
    h = h + b_ref[...]
    a = alpha_ref[0]
    o_ref[...] = jnp.where(h >= 0, h, a * h).astype(o_ref.dtype)   # PReLU


def fused_forward(pooled, w_total, b_head, alpha, *,
                  block_m=512, out_dtype=jnp.float32):
    """pooled [N, k*k] (bf16) -> embeddings [N, E], one pallas_call."""
    N, KK = pooled.shape
    KK2, E = w_total.shape
    assert KK == KK2 and b_head.shape == (1, E)

    # Batch tiling (no host-side padding; Pallas masks the ragged last block):
    #  - tiny N: single full block (block dims == array dims, always legal)
    #  - otherwise: aim for grid >= 2 (megacore sharding on v7x) with tiles
    #    that are multiples of 8 sublanes, capped at block_m.
    if N <= 8:
        tm = N
    else:
        half = -(-N // 2)                       # ceil(N / 2)
        tm = min(block_m, ((half + 7) // 8) * 8)
    grid = (pl.cdiv(N, tm),)

    out_itemsize = jnp.dtype(out_dtype).itemsize
    flops = 2 * N * KK * E
    bytes_accessed = (N * KK * 2          # pooled (bf16)
                      + KK * E * 2        # folded weight (bf16)
                      + E * 4 + 4         # bias + alpha
                      + N * E * out_itemsize)

    return pl.pallas_call(
        _head_kernel,
        out_shape=jax.ShapeDtypeStruct((N, E), out_dtype),
        grid=grid,
        in_specs=[
            pl.BlockSpec((tm, KK), lambda i: (i, 0)),           # pooled (tiled)
            pl.BlockSpec((KK, E), lambda i: (0, 0)),            # folded weight
            pl.BlockSpec((1, E), lambda i: (0, 0)),             # folded bias
            pl.BlockSpec(memory_space=pltpu.MemorySpace.SMEM),  # PReLU alpha
        ],
        out_specs=pl.BlockSpec((tm, E), lambda i: (i, 0)),
        compiler_params=pltpu.CompilerParams(
            dimension_semantics=("parallel",)),                 # megacore v7x
        cost_estimate=pl.CostEstimate(flops=flops, transcendentals=0,
                                      bytes_accessed=bytes_accessed),
    )(pooled, w_total, b_head, alpha)


# ---------------------------------------------------------------------------
# Forward: tiny host-side strided mean (one pass over the image, emits N*k*k
# values — no transposed patch tensor materialized in HBM), then the fused
# Pallas kernel does the single folded matmul + bias + PReLU.
# ---------------------------------------------------------------------------
def patentnet_forward(x, folded, k, out_dtype=jnp.float32):
    N, C, H, W = x.shape
    assert C == 1 and H % k == 0 and W % k == 0
    ph, pw = H // k, W // k
    # mean over patch positions commutes with the (linear) patch-embed matmul:
    #   mean_P(patch_embed(x)) @ rest == (mean_P(patches)) @ (w_grey @ rest)
    pooled = x.reshape(N, ph, k, pw, k).mean(axis=(1, 3)).reshape(N, k * k)
    return fused_forward(pooled.astype(jnp.bfloat16),
                         folded["w_total"], folded["b_head"], folded["alpha"],
                         out_dtype=out_dtype)


# ---------------------------------------------------------------------------
# Parameters: raw (PyTorch-equivalent) and host-side folding.
# ---------------------------------------------------------------------------
def make_params(key, k, c_out, in_features, embedding_size):
    ks = jax.random.split(key, 8)
    # "original" conv1 weight [C_out, 3, k, k]; greyscale = mean over RGB dim,
    # flattened to [k*k, C_out] in (kh, kw) row order (matches patch flatten).
    w_orig = jax.random.normal(ks[0], (c_out, 3, k, k), jnp.float32) * 0.02
    w_grey = jnp.mean(w_orig, axis=1).transpose(1, 2, 0).reshape(k * k, c_out)

    proj_w = jax.random.normal(ks[1], (c_out, in_features), jnp.float32) * 0.02

    return {
        "conv1_w_grey": w_grey,
        "proj_w": proj_w,
        # BatchNorm1d(512) running stats + affine
        "bn1_g": jnp.ones((1, in_features), jnp.float32),
        "bn1_b": jnp.zeros((1, in_features), jnp.float32),
        "bn1_m": (jax.random.normal(ks[2], (1, in_features)) * 0.1
                  ).astype(jnp.float32),
        "bn1_v": (jnp.abs(jax.random.normal(ks[3], (1, in_features))) + 0.5
                  ).astype(jnp.float32),
        # Linear(512, E)
        "lin_w": (jax.random.normal(ks[4], (in_features, embedding_size))
                  * (1.0 / jnp.sqrt(in_features))).astype(jnp.float32),
        "lin_b": jnp.zeros((1, embedding_size), jnp.float32),
        # BatchNorm1d(E)
        "bn2_g": jnp.ones((1, embedding_size), jnp.float32),
        "bn2_b": jnp.zeros((1, embedding_size), jnp.float32),
        "bn2_m": (jax.random.normal(ks[5], (1, embedding_size)) * 0.1
                  ).astype(jnp.float32),
        "bn2_v": (jnp.abs(jax.random.normal(ks[6], (1, embedding_size))) + 0.5
                  ).astype(jnp.float32),
        # PReLU (default init 0.25, num_parameters=1)
        "prelu_a": jnp.full((1, 1), 0.25, jnp.float32),
    }


def fold_params(params, eps=1e-5):
    """Host-side algebraic folding (inference / running stats), all in f32.

    Valid because every op between the patch-embed and PReLU is affine:
      conv1(grey) -> mean-pool -> proj -> BN1 -> Dropout(eval=id)
      -> Linear -> BN2  collapses to  x_pooled @ w_total + b_head.
    """
    w_embed = params["conv1_w_grey"] @ params["proj_w"]          # [k*k, 512]
    a1 = params["bn1_g"] * jax.lax.rsqrt(params["bn1_v"] + eps)  # [1, 512]
    c1 = params["bn1_b"] - params["bn1_m"] * a1
    a2 = params["bn2_g"] * jax.lax.rsqrt(params["bn2_v"] + eps)  # [1, E]
    c2 = params["bn2_b"] - params["bn2_m"] * a2
    w_head = (a1.T * params["lin_w"]) * a2                       # [512, E]
    b_head = (c1 @ params["lin_w"] + params["lin_b"]) * a2 + c2  # [1, E]
    w_total = w_embed @ w_head                                   # [k*k, E] f32
    return {
        "w_total": w_total.astype(jnp.bfloat16),                 # single cast
        "b_head": b_head.astype(jnp.float32),
        "alpha": params["prelu_a"].reshape(-1)[:1].astype(jnp.float32),  # (1,)
    }


# ---------------------------------------------------------------------------
# Pure-JAX f32 reference of the original (unfolded, unfused) forward.
# ---------------------------------------------------------------------------
def reference_forward(x, params, k, eps=1e-5):
    N, _, H, W = x.shape
    ph, pw = H // k, W // k
    patches = (x.reshape(N, ph, k, pw, k)
                 .transpose(0, 1, 3, 2, 4)
                 .reshape(N, ph * pw, k * k))
    tokens = patches @ params["conv1_w_grey"]                    # [N, P, C_out]
    pooled = tokens.mean(axis=1)                                 # [N, C_out]
    feats = pooled @ params["proj_w"]                            # [N, 512]
    xn = (feats - params["bn1_m"]) * jax.lax.rsqrt(params["bn1_v"] + eps) \
         * params["bn1_g"] + params["bn1_b"]
    h = xn @ params["lin_w"] + params["lin_b"]                   # Dropout: id
    hn = (h - params["bn2_m"]) * jax.lax.rsqrt(params["bn2_v"] + eps) \
         * params["bn2_g"] + params["bn2_b"]
    a = params["prelu_a"][0, 0]
    return jnp.where(hn >= 0, hn, a * hn)


# ---------------------------------------------------------------------------
if __name__ == "__main__":
    N, H, W = 8, 16, 16
    K_PATCH = 4
    C_OUT = 64
    IN_FEATURES = 512
    EMBEDDING_SIZE = 128      # multiple of 128 -> lane-dense output stores

    key = jax.random.PRNGKey(0)
    kx, kp = jax.random.split(key)
    x = jax.random.normal(kx, (N, 1, H, W), jnp.float32)
    params = make_params(kp, K_PATCH, C_OUT, IN_FEATURES, EMBEDDING_SIZE)
    folded = fold_params(params)

    fwd = jax.jit(functools.partial(patentnet_forward, k=K_PATCH))
    out = jax.block_until_ready(fwd(x, folded))

    assert out.shape == (N, EMBEDDING_SIZE)
    assert out.dtype == jnp.float32

    ref = jax.block_until_ready(reference_forward(x, params, K_PATCH))
    np.testing.assert_allclose(np.asarray(out), np.asarray(ref),
                               rtol=5e-2, atol=5e-2)
    print("KERNEL_OK")
</pallas_src>

<mosaic_0001>
module attributes {stable_mosaic.version = 11 : i64} {
  func.func @_head_kernel(%arg0: i32, %arg1: memref<8x16xbf16, #tpu.memory_space<vmem>>, %arg2: memref<16x128xbf16, #tpu.memory_space<vmem>>, %arg3: memref<1x128xf32, #tpu.memory_space<vmem>>, %arg4: memref<1xf32, #tpu.memory_space<smem>>, %arg5: memref<8x128xf32, #tpu.memory_space<vmem>>) attributes {dimension_semantics = [#tpu.dimension_semantics<parallel>], iteration_bounds = array<i64: 1>, scalar_prefetch = 0 : i64, scratch_operands = 0 : i64, tpu.core_type = #tpu.core_type<tc>, window_params = [{transform_indices = @transform_0, window_bounds = array<i64: 8, 16>}, {pipeline_mode = #tpu.pipeline_mode<synchronous>, transform_indices = @transform_1, window_bounds = array<i64: 16, 128>}, {pipeline_mode = #tpu.pipeline_mode<synchronous>, transform_indices = @transform_2, window_bounds = array<i64: 1, 128>}, {transform_indices = @transform_3, window_bounds = array<i64: 1>}, {transform_indices = @transform_4, window_bounds = array<i64: 8, 128>}]} {
    %c0 = arith.constant 0 : index
    %c0_0 = arith.constant 0 : index
    %0 = vector.load %arg1[%c0, %c0_0] : memref<8x16xbf16, #tpu.memory_space<vmem>>, vector<8x16xbf16>
    %c0_1 = arith.constant 0 : index
    %c0_2 = arith.constant 0 : index
    %1 = vector.load %arg2[%c0_1, %c0_2] : memref<16x128xbf16, #tpu.memory_space<vmem>>, vector<16x128xbf16>
    %cst = arith.constant dense<0.000000e+00> : vector<8x128xf32>
    %2 = tpu.matmul %0, %1, %cst {dimension_numbers = #tpu.dot_dimension_numbers<[1], [0], [0], [1], [0, 0, 1, 1], [], []>} : vector<8x16xbf16>, vector<16x128xbf16>, vector<8x128xf32> -> vector<8x128xf32>
    %c0_3 = arith.constant 0 : index
    %c0_4 = arith.constant 0 : index
    %3 = vector.load %arg3[%c0_3, %c0_4] : memref<1x128xf32, #tpu.memory_space<vmem>>, vector<1x128xf32>
    %4 = vector.broadcast %3 : vector<1x128xf32> to vector<8x128xf32>
    %5 = arith.addf %2, %4 : vector<8x128xf32>
    %c0_5 = arith.constant 0 : index
    %6 = memref.load %arg4[%c0_5] : memref<1xf32, #tpu.memory_space<smem>>
    %cst_6 = arith.constant 0.000000e+00 : f32
    %7 = vector.broadcast %cst_6 : f32 to vector<8x128xf32>
    %8 = arith.cmpf oge, %5, %7 : vector<8x128xf32>
    %9 = vector.broadcast %6 : f32 to vector<8x128xf32>
    %10 = arith.mulf %9, %5 : vector<8x128xf32>
    %11 = arith.select %8, %5, %10 : vector<8x128xi1>, vector<8x128xf32>
    %c0_7 = arith.constant 0 : index
    %c0_8 = arith.constant 0 : index
    %12 = vector.load %arg5[%c0_7, %c0_8] : memref<8x128xf32, #tpu.memory_space<vmem>>, vector<8x128xf32>
    tpu.vector_store %arg5[%c0_7, %c0_8], %11 {strides = array<i32>} : memref<8x128xf32, #tpu.memory_space<vmem>>, vector<8x128xf32>,
    return
  }
  func.func @transform_0(%arg0: i32) -> (i32, i32) {
    %c0_i32 = arith.constant 0 : i32
    %c0_i32_0 = arith.constant 0 : i32
    return %arg0, %c0_i32 : i32, i32
  }
  func.func @transform_1(%arg0: i32) -> (i32, i32) {
    %c0_i32 = arith.constant 0 : i32
    %c0_i32_0 = arith.constant 0 : i32
    %c0_i32_1 = arith.constant 0 : i32
    return %c0_i32, %c0_i32_0 : i32, i32
  }
  func.func @transform_2(%arg0: i32) -> (i32, i32) {
    %c0_i32 = arith.constant 0 : i32
    %c0_i32_0 = arith.constant 0 : i32
    %c0_i32_1 = arith.constant 0 : i32
    return %c0_i32, %c0_i32_0 : i32, i32
  }
  func.func @transform_3(%arg0: i32) -> i32 {
    %c0_i32 = arith.constant 0 : i32
    %c0_i32_0 = arith.constant 0 : i32
    return %c0_i32 : i32
  }
  func.func @transform_4(%arg0: i32) -> (i32, i32) {
    %c0_i32 = arith.constant 0 : i32
    %c0_i32_0 = arith.constant 0 : i32
    return %arg0, %c0_i32 : i32, i32
  }
}

</mosaic_0001>

<llo_original>
// kernel: patentnet_forward.1
$region0: #{patentnet_forward.1}
  #allocation0 [shape = 'u32[]', space=smem, size = 0x4, offset = 0x4, fixed_abs, tag = 'smem constant byte address 0x4 - core index']
  #allocation1 [shape = 'u32[72,128]{1,0:T(1,128)}', space=vmem, size = 0x9000, scoped, tag = 'internal scratch']
  #allocation2 [shape = 'f32[1]{0:T(128)S(6)}', space=smem, size = 0x200, scoped, tag = 'scoped memory for patentnet_forward.1']
  %s0 = inlined_call_operand.vmem [shape: bf16[8,16], index: 0, kind: input, shape index: {}]
  %s1 = inlined_call_operand.vmem [shape: bf16[16,128], index: 1, kind: input, shape index: {}]
  %s2 = inlined_call_operand.vmem [shape: f32[1,128], index: 2, kind: input, shape index: {}]
  %s3 = inlined_call_operand.<no memory space> [shape: f32[1], index: 3, kind: input, shape index: {}]
  %s4 = inlined_call_operand.hbm [shape: f32[8,128], index: 4, kind: output, shape index: {}]
  %s5 = sld [smem:[#allocation0]]
  $region26: #{patentnet_forward.1} parent=0
    _
  %s7 = ssub.s32 1, %s5
  %s8 = scalar_select 0, %s7, %s5
  %9 = sst [smem:[#allocation2]] %s3
  $region1: #{patentnet_forward.1} parent=0
    #allocation3 [shape = 'u8[4096]{0}', space=vmem, size = 0x1000, scoped, tag = 'output window, operand 0, single buffered']
    #allocation4 [shape = 's32[1]{0}', space=sflag, size = 0x4, scoped, tag = 'scoped memory for patentnet_forward.1']
    %10 = vsyncpa [#allocation4], 0
    // Predicated region
    $region2: #{patentnet_forward.1} parent=1 // pred_check
      _
    $region3: #{patentnet_forward.1} parent=1 // pred_check_branch
      %12 = sbr.rel (0) target = $region5
    $region4: #{patentnet_forward.1} parent=1 // pred_region
      _
    $region5: #{patentnet_forward.1} parent=1 // pred_fallthru
      _
    // Predicated region
    $region6: #{patentnet_forward.1} parent=1 // pred_check
      _
    $region7: #{patentnet_forward.1} parent=1 // pred_check_branch
      %14 = sbr.rel (0) target = $region9
    $region8: #{patentnet_forward.1} parent=1 // pred_region
      _
    $region9: #{patentnet_forward.1} parent=1 // pred_fallthru
      _
    // Predicated region
    $region10: #{patentnet_forward.1} parent=1 // pred_check
      _
    $region11: #{patentnet_forward.1} parent=1 // pred_check_branch
      %16 = sbr.rel (0) target = $region13
    $region12: #{patentnet_forward.1} parent=1 // pred_region
      _
    $region13: #{patentnet_forward.1} parent=1 // pred_fallthru
      _
    // Predicated region
    $region14: #{patentnet_forward.1} parent=1 // pred_check
      _
    $region15: #{patentnet_forward.1} parent=1 // pred_check_branch
      %18 = sbr.rel (0) target = $region17
    $region16: #{patentnet_forward.1} parent=1 // pred_region
      _
    $region17: #{patentnet_forward.1} parent=1 // pred_fallthru
      _
    %v20 = vld [vmem:[%s0] sm:$0xf]
    %v21 = vld [vmem:[%s1] sm:$0xf]
    %v22 = vld [vmem:[%s1 + $0x4] sm:$0xf]
    %v23 = vld [vmem:[%s2] sm:$0x1]
    %v25 = vperm.slane %v23, 0
    %v29 = vunpack.c.l.b16 %v21
    %v30 = vunpack.c.l.b16 %v22
    %v31 = vpack.c.b16 %v30, %v29
    %vm33 = vcmask 130048
    %v35 = vsel %vm33, %v20, 0
    %37 = vmatpush.bf16.msra.mxu0 0
    %38 = vmatpush.bf16.msra.mxu0 0
    %39 = vmatpush.bf16.msra.mxu0 0
    %40 = vmatpush.bf16.msra.mxu0 0
    %41 = vmatpush.bf16.msra.mxu0 0
    %42 = vmatpush.bf16.msra.mxu0 0
    %43 = vmatpush.bf16.msra.mxu0 0
    %44 = vmatpush.bf16.msra.mxu0 %v31
    %45 = vmatmul.bf16.gmra.mxu0 %v35
    %v46 = vpop.f32.mrf.mxu0
    %v47 = vadd.f32 %v25, %v46
    %v48 = vpop.f32.mrf.mxu0
    %49 = vdwg.mxu0
    %s50 = sld [smem:[#allocation2]]
    %vm51 = vcmp.ge.f32.partialorder %v47, 0.0
    %v52 = vstv %s50
    %v53 = vmul.f32 %v52, %v47
    %v54 = vsel %vm51, %v47, %v53
    %55 = vst [vmem:[#allocation3] sm:$0xff] %v54
    // Predicated region
    $region18: #{patentnet_forward.1} parent=1 // pred_check
      _
    $region19: #{patentnet_forward.1} parent=1 // pred_check_branch
      %57 = sbr.rel (0) target = $region21
    $region20: #{patentnet_forward.1} parent=1 // pred_region
      %59 = vsyncadd [#allocation4], 0
      %s61 = sshll.u32 [#allocation3], 4
      %s62 = int_to_ptr.vmem [resolvable:$true] %s61
      %s63 = sshll.u32 %s4, 4
      %s64 = int_to_ptr.hbm [resolvable:$true] %s63
      %66 = dma.vmem_to_hbm [thread:$0]  %s62, 128, %s64, [#allocation4]
    $region21: #{patentnet_forward.1} parent=1 // pred_fallthru
      _
    // Predicated region
    $region22: #{patentnet_forward.1} parent=1 // pred_check
      _
    $region23: #{patentnet_forward.1} parent=1 // pred_check_branch
      %68 = sbr.rel (0) target = $region25
    $region24: #{patentnet_forward.1} parent=1 // pred_region
      %70 = dma.done [#allocation4], 128
    $region25: #{patentnet_forward.1} parent=1 // pred_fallthru
      _
    %71 = vsyncpa [#allocation4], 1

</llo_original>
